<compile_context>
chip_gen: v7x
topology: tpu7x:2x2x1
jax: 0.10.0
libtpu: 0.0.40
codegen_flags: <defaults>
</compile_context>

<pallas_src>
import jax
import jax.numpy as jnp
from jax.experimental import pallas as pl
from jax.experimental.pallas import tpu as pltpu


# ----------------------------- in-kernel helpers ---------------------------- #

def _softmax_rows(x):
    # x: (B, L) f32, softmax over the lane axis (last dim).
    m = jnp.max(x, axis=-1, keepdims=True)
    ex = jnp.exp(x - m)
    denom = jnp.sum(ex, axis=-1, keepdims=True)
    return ex * pl.reciprocal(denom, approx=True)   # EUP reciprocal, free slot


# ----------------------------------- kernels -------------------------------- #
# Single invocation (grid=()), whole problem in VMEM:
#   h_ref : (B, H)   e_ref : (B, L, H)   o_ref : (B, L)

def _dot_kernel(h_ref, e_ref, o_ref):
    h = h_ref[...]                                                     # (B, H)
    e = e_ref[...]                                                     # (B, L, H)
    # VPU multiply + lane reduce over H (MXU matvec with M=1 would be ~idle).
    scores = jnp.sum(h[:, None, :] * e, axis=-1).astype(jnp.float32)   # (B, L)
    o_ref[...] = _softmax_rows(scores).astype(o_ref.dtype)


def _general_kernel(h_ref, e_ref, w_ref, o_ref):
    # scores[b,l] = hidden[b] . (W @ enc[b,l] + bias)
    #             = (hidden[b] @ W) . enc[b,l] + hidden[b].bias
    # The bias term is constant over L and cancels in the row softmax, so it is
    # intentionally omitted.  The hidden projection is a single (B,H)x(H,H)
    # MXU matmul for all batch rows.
    e = e_ref[...]                                                     # (B, L, H)
    q = jnp.dot(h_ref[...], w_ref[...],
                preferred_element_type=jnp.float32).astype(e.dtype)    # (B, H)
    scores = jnp.sum(q[:, None, :] * e, axis=-1).astype(jnp.float32)   # (B, L)
    o_ref[...] = _softmax_rows(scores).astype(o_ref.dtype)


def _concat_kernel(h_ref, e_ref, wht_ref, wet_ref, b_ref, v_ref, o_ref):
    f32 = jnp.float32
    B, L, H = e_ref.shape
    # hidden projection + bias: one (B,H)x(H,H) matmul, bias hoisted out of the
    # (B,L,H) broadcast.
    hp = (jnp.dot(h_ref[...], wht_ref[...], preferred_element_type=f32)
          + b_ref[...].astype(f32))                                    # (B, H)
    # encoder projection: one (B*L,H)x(H,H) matmul (contiguous sublane merge,
    # free since L is a multiple of 8).
    e2 = e_ref[...].reshape(B * L, H)                                  # (B*L, H)
    ep = jnp.dot(e2, wet_ref[...], preferred_element_type=f32)         # (B*L, H)
    energy = jnp.tanh(ep.reshape(B, L, H) + hp[:, None, :])            # (B, L, H)
    scores = jnp.sum(v_ref[...].astype(f32) * energy, axis=-1)         # (B, L)
    o_ref[...] = _softmax_rows(scores).astype(o_ref.dtype)


# ----------------------------------- wrapper -------------------------------- #

def attn_forward(method, hidden, encoder_outputs, params):
    """Mirrors Attn.forward. hidden: (1,B,H), encoder_outputs: (L,B,H) -> (B,1,L)."""
    L, B, H = encoder_outputs.shape
    out_dtype = hidden.dtype

    # Layout plumbing done once on the XLA side (not inside the kernel).
    # TODO(synk): in a real decode loop, compute this (B,L,H) relayout once per
    # sequence and reuse it across decode steps.
    h2 = hidden.reshape(B, H)                           # (B, H)
    enc = jnp.transpose(encoder_outputs, (1, 0, 2))     # (B, L, H)

    vmem = pl.BlockSpec(memory_space=pltpu.MemorySpace.VMEM)
    out_shape = jax.ShapeDtypeStruct((B, L), out_dtype)

    if method == "dot":
        scores = pl.pallas_call(
            _dot_kernel, out_shape=out_shape,
            in_specs=[vmem, vmem], out_specs=vmem,
        )(h2, enc)

    elif method == "general":
        W = params["attn_w"]                            # (H, H) nn.Linear weight (out, in)
        scores = pl.pallas_call(
            _general_kernel, out_shape=out_shape,
            in_specs=[vmem, vmem, vmem], out_specs=vmem,
        )(h2, enc, W)

    elif method == "concat":
        W, bias, v = params["attn_w"], params["attn_b"], params["v"]
        # Host-side split + transpose of the (H, 2H) Linear weight: no in-kernel
        # W.T and no lane-unaligned column slicing.
        wht = jnp.transpose(W[:, :H])                   # (H, H): hidden half, pre-T
        wet = jnp.transpose(W[:, H:])                   # (H, H): encoder half, pre-T
        scores = pl.pallas_call(
            _concat_kernel, out_shape=out_shape,
            in_specs=[vmem, vmem, vmem, vmem, vmem, vmem], out_specs=vmem,
        )(h2, enc, wht, wet, bias.reshape(1, H), v.reshape(1, H))

    else:
        raise ValueError(method, "is not an appropriate attention method.")

    return scores.reshape(B, 1, L)                      # metadata-only reshape


# ----------------------------- pure-JAX reference ---------------------------- #

def attn_reference(method, hidden, encoder_outputs, params):
    h = hidden                                                # (1, B, H)
    enc = encoder_outputs                                     # (L, B, H)
    if method == "dot":
        scores = jnp.sum(h * enc, axis=2)
    elif method == "general":
        energy = jnp.einsum("lbh,oh->lbo", enc, params["attn_w"]) + params["attn_b"]
        scores = jnp.sum(h * energy, axis=2)
    elif method == "concat":
        cat = jnp.concatenate([jnp.broadcast_to(h, enc.shape), enc], axis=2)
        energy = jnp.tanh(jnp.einsum("lbc,oc->lbo", cat, params["attn_w"])
                          + params["attn_b"])
        scores = jnp.sum(params["v"] * energy, axis=2)
    scores = scores.T                                         # (B, L)
    return jax.nn.softmax(scores, axis=1)[:, None, :]         # (B, 1, L)


# ------------------------------------ main ----------------------------------- #

if __name__ == "__main__":
    B, L, H = 2, 8, 32
    key = jax.random.PRNGKey(0)
    k_h, k_e, k_w1, k_b1, k_w2, k_b2, k_v = jax.random.split(key, 7)

    hidden = jax.random.normal(k_h, (1, B, H), dtype=jnp.float32)
    encoder_outputs = jax.random.normal(k_e, (L, B, H), dtype=jnp.float32)

    params_by_method = {
        "dot": {},
        "general": {
            "attn_w": jax.random.normal(k_w1, (H, H), dtype=jnp.float32) * 0.1,
            "attn_b": jax.random.normal(k_b1, (H,), dtype=jnp.float32) * 0.1,
        },
        "concat": {
            "attn_w": jax.random.normal(k_w2, (H, 2 * H), dtype=jnp.float32) * 0.1,
            "attn_b": jax.random.normal(k_b2, (H,), dtype=jnp.float32) * 0.1,
            "v": jax.random.normal(k_v, (H,), dtype=jnp.float32) * 0.1,
        },
    }

    # Tolerance is 1e-3: the kernel uses the EUP approximate reciprocal for the
    # softmax normalization and (for 'general') drops the softmax-invariant
    # hidden.bias term, both of which perturb results only at ~1e-4 level.
    for method in ("dot", "general", "concat"):
        params = params_by_method[method]
        out = attn_forward(method, hidden, encoder_outputs, params)
        out = jax.block_until_ready(out)
        ref = attn_reference(method, hidden, encoder_outputs, params)
        assert out.shape == (B, 1, L), (method, out.shape)
        err = float(jnp.max(jnp.abs(out - ref)))
        assert jnp.allclose(out, ref, atol=1e-3, rtol=1e-3), (
            f"mismatch for method={method}: max err {err}"
        )

    print("KERNEL_OK")
</pallas_src>

<mosaic_0001>
module attributes {stable_mosaic.version = 11 : i64} {
  func.func @_dot_kernel(%arg0: memref<2x32xf32, #tpu.memory_space<vmem>>, %arg1: memref<2x8x32xf32, #tpu.memory_space<vmem>>, %arg2: memref<2x8xf32, #tpu.memory_space<vmem>>) attributes {dimension_semantics = [], scalar_prefetch = 0 : i64, scratch_operands = 0 : i64, tpu.core_type = #tpu.core_type<tc>} {
    %c0 = arith.constant 0 : index
    %c0_0 = arith.constant 0 : index
    %0 = vector.load %arg0[%c0, %c0_0] : memref<2x32xf32, #tpu.memory_space<vmem>>, vector<2x32xf32>
    %c0_1 = arith.constant 0 : index
    %c0_2 = arith.constant 0 : index
    %c0_3 = arith.constant 0 : index
    %1 = vector.load %arg1[%c0_1, %c0_2, %c0_3] : memref<2x8x32xf32, #tpu.memory_space<vmem>>, vector<2x8x32xf32>
    %2 = vector.shape_cast %0 : vector<2x32xf32> to vector<2x1x32xf32>
    %3 = vector.broadcast %2 : vector<2x1x32xf32> to vector<2x8x32xf32>
    %4 = arith.mulf %3, %1 : vector<2x8x32xf32>
    %cst = arith.constant dense<0.000000e+00> : vector<2x8xf32>
    %5 = vector.multi_reduction <add>, %4, %cst [2] : vector<2x8x32xf32> to vector<2x8xf32>
    %cst_4 = arith.constant dense<0xFF800000> : vector<2xf32>
    %6 = vector.multi_reduction <maximumf>, %5, %cst_4 [1] : vector<2x8xf32> to vector<2xf32>
    %7 = vector.shape_cast %6 : vector<2xf32> to vector<2x1xf32>
    %8 = vector.broadcast %7 : vector<2x1xf32> to vector<2x8xf32>
    %9 = arith.subf %5, %8 : vector<2x8xf32>
    %10 = math.exp %9 : vector<2x8xf32>
    %cst_5 = arith.constant dense<0.000000e+00> : vector<2xf32>
    %11 = vector.multi_reduction <add>, %10, %cst_5 [1] : vector<2x8xf32> to vector<2xf32>
    %12 = vector.shape_cast %11 : vector<2xf32> to vector<2x1xf32>
    %13 = tpu.reciprocal %12 {approx = true} : vector<2x1xf32> -> vector<2x1xf32>
    %14 = vector.broadcast %13 : vector<2x1xf32> to vector<2x8xf32>
    %15 = arith.mulf %10, %14 : vector<2x8xf32>
    %c0_6 = arith.constant 0 : index
    %c0_7 = arith.constant 0 : index
    %16 = vector.load %arg2[%c0_6, %c0_7] : memref<2x8xf32, #tpu.memory_space<vmem>>, vector<2x8xf32>
    tpu.vector_store %arg2[%c0_6, %c0_7], %15 {strides = array<i32>} : memref<2x8xf32, #tpu.memory_space<vmem>>, vector<2x8xf32>,
    return
  }
}

</mosaic_0001>

<llo_original>
// kernel: tpu_custom_call.1
$region0: #{tpu_custom_call.1}
  #allocation0 [shape = 'u32[]', space=smem, size = 0x4, offset = 0x4, fixed_abs, tag = 'smem constant byte address 0x4 - core index']
  #allocation1 [shape = 'u32[144,128]{1,0:T(1,128)}', space=vmem, size = 0x12000, scoped, tag = 'internal scratch']
  %s0 = inlined_call_operand.hbm [shape: f32[2,32], index: 0, kind: input, shape index: {}]
  %s1 = inlined_call_operand.hbm [shape: f32[2,8,32], index: 1, kind: input, shape index: {}]
  %s2 = inlined_call_operand.hbm [shape: f32[2,8], index: 2, kind: output, shape index: {}]
  %s3 = sld [smem:[#allocation0]]
  $region26: #{tpu_custom_call.1} parent=0
    _
  %s5 = ssub.s32 1, %s3
  %s6 = scalar_select 0, %s5, %s3
  $region1: #{tpu_custom_call.1} parent=0
    #allocation2 [shape = 'u8[1024]{0}', space=vmem, size = 0x400, scoped, tag = 'input window, operand 0, single buffered']
    #allocation3 [shape = 's32[1]{0}', space=sflag, size = 0x4, scoped, tag = 'scoped memory for tpu_custom_call.1']
    #allocation4 [shape = 's32[1]{0}', space=sflag, size = 0x4, scoped, tag = 'scoped memory for tpu_custom_call.1']
    #allocation5 [shape = 'u8[8192]{0}', space=vmem, size = 0x2000, scoped, tag = 'input window, operand 1, single buffered']
    #allocation6 [shape = 's32[1]{0}', space=sflag, size = 0x4, scoped, tag = 'scoped memory for tpu_custom_call.1']
    #allocation7 [shape = 'u8[1024]{0}', space=vmem, size = 0x400, scoped, tag = 'output window, operand 0, single buffered']
    %7 = vsyncpa [#allocation3], 0
    %8 = vsyncpa [#allocation6], 0
    %9 = vsyncpa [#allocation4], 0
    // Predicated region
    $region2: #{tpu_custom_call.1} parent=1 // pred_check
      _
    $region3: #{tpu_custom_call.1} parent=1 // pred_check_branch
      %11 = sbr.rel (0) target = $region5
    $region4: #{tpu_custom_call.1} parent=1 // pred_region
      %s13 = ssub.s32 32, 32
      %14 = vsyncadd [#allocation3], %s13
      %s16 = sshll.u32 [#allocation2], 4
      %s17 = int_to_ptr.vmem [resolvable:$true] %s16
      %19 = dma.hbm_to_vmem [thread:$0]  %s0, 32, %s17, [#allocation3]
    $region5: #{tpu_custom_call.1} parent=1 // pred_fallthru
      _
    // Predicated region
    $region6: #{tpu_custom_call.1} parent=1 // pred_check
      _
    $region7: #{tpu_custom_call.1} parent=1 // pred_check_branch
      %21 = sbr.rel (0) target = $region9
    $region8: #{tpu_custom_call.1} parent=1 // pred_region
      %s23 = ssub.s32 256, 256
      %24 = vsyncadd [#allocation6], %s23
      %s25 = sshll.u32 [#allocation5], 4
      %s26 = int_to_ptr.vmem [resolvable:$true] %s25
      %31 = dma.hbm_to_vmem [thread:$0]  %s1, 256, %s26, [#allocation6], 128, 128, 8
    $region9: #{tpu_custom_call.1} parent=1 // pred_fallthru
      _
    // Predicated region
    $region10: #{tpu_custom_call.1} parent=1 // pred_check
      _
    $region11: #{tpu_custom_call.1} parent=1 // pred_check_branch
      %33 = sbr.rel (0) target = $region13
    $region12: #{tpu_custom_call.1} parent=1 // pred_region
      %34 = dma.done [#allocation3], 32
    $region13: #{tpu_custom_call.1} parent=1 // pred_fallthru
      _
    // Predicated region
    $region14: #{tpu_custom_call.1} parent=1 // pred_check
      _
    $region15: #{tpu_custom_call.1} parent=1 // pred_check_branch
      %36 = sbr.rel (0) target = $region17
    $region16: #{tpu_custom_call.1} parent=1 // pred_region
      %37 = dma.done [#allocation6], 256
    $region17: #{tpu_custom_call.1} parent=1 // pred_fallthru
      _
    %v38 = vld [vmem:[#allocation2] sm:$0x3]
    %v39 = vld [vmem:[#allocation5] sm:$0xff]
    %v40 = vld [vmem:[#allocation5 + $0x8] sm:$0xff]
    %v43 = vunpack.c.l.s4 1966171168
    %v44 = vunpack.c.0.s8 %v43
    %v45 = vlaneseq
    %v46 = vshrl.u32 %v45, 7
    %v47 = vsub.s32 %v44, %v46
    %v48 = vrot.slane %v38, %v47
    %v49 = vcombine.high %v48, %v48
    %v51 = vunpack.c.l.s4 1966171168
    %v52 = vunpack.c.0.s8 %v51
    %v53 = vlaneseq
    %v54 = vshrl.u32 %v53, 7
    %v55 = vsub.s32 %v52, %v54
    %v56 = vrot.slane %v48, %v55
    %v58 = vunpack.c.l.s4 1966171168
    %v59 = vunpack.c.0.s8 %v58
    %v60 = vlaneseq
    %v61 = vshrl.u32 %v60, 7
    %v62 = vsub.s32 %v59, %v61
    %v63 = vrot.slane %v49, %v62
    %v64 = vlaneseq
    %v65 = vshrl.u32 %v64, 7
    %v66 = vsub.s32 0, %v65
    %v67 = vrot.slane %v56, %v66
    %v68 = vlaneseq
    %v69 = vshrl.u32 %v68, 7
    %v70 = vsub.s32 0, %v69
    %v71 = vrot.slane %v63, %v70
    %v74 = vmul.f32 %v67, %v39
    %v75 = vmul.f32 %v71, %v40
    %vm76 = vcmask 261120
    %v77 = vsel %vm76, %v74, 0.0
    %78 = vadd.xlane.f32.xlu0 %v77
    %v79 = vpop.xlane.xlu0 %78
    %v80 = vsel %vm76, %v75, 0.0
    %81 = vadd.xlane.f32.xlu0 %v80
    %v82 = vpop.xlane.xlu0 %81
    %v85 = vlaneseq
    %v86 = vand.u32 %v85, 127
    %v87 = vlaneseq
    %v88 = vshrl.u32 %v87, 7
    %v89 = vsub.s32 %v86, %v88
    %v90 = vrot.slane %v79, %v89
    %v91 = vlaneseq
    %v92 = vshrl.u32 %v91, 7
    %v93 = vsub.s32 %v86, %v92
    %v94 = vrot.slane %v82, %v93
    %vm95 = vcmask 1041409
    %v96 = vsel %vm95, %v94, %v90
    %vm98 = vcmask 58368
    %v99 = vsel %vm98, %v96, -inf
    %100 = vmax.xlane.f32.xlu0 %v99
    %v101 = vpop.xlane.xlu0 %100
    %v103 = vlaneseq
    %v104 = vshrl.u32 %v103, 7
    %v105 = vsub.s32 0, %v104
    %v106 = vrot.slane %v101, %v105
    %v107 = vlaneseq
    %v108 = vshrl.u32 %v107, 7
    %v109 = vsub.s32 1, %v108
    %v110 = vrot.slane %v101, %v109
    %v113 = vsub.f32 %v79, %v106
    %v114 = vsub.f32 %v82, %v110
    %v115 = vmul.f32 %v113, 1.442695
    %v116 = vpow.pop %v115
    %v117 = vmul.f32 %v114, 1.442695
    %v118 = vpow.pop %v117
    %121 = vset.pattern.permute.xlu0 0
    %122 = vperm.xlu0 %121, %v116
    %v123 = vpop.permute.xlu0 %122
    %124 = vset.pattern.permute.xlu0 0
    %125 = vperm.xlu0 %124, %v118
    %v126 = vpop.permute.xlu0 %125
    %v127 = vlaneseq
    %v128 = vshrl.u32 %v127, 7
    %v129 = vsub.s32 %v86, %v128
    %v130 = vrot.slane %v123, %v129
    %v131 = vlaneseq
    %v132 = vshrl.u32 %v131, 7
    %v133 = vsub.s32 %v86, %v132
    %v134 = vrot.slane %v126, %v133
    %v135 = vsel %vm95, %v134, %v130
    %v137 = vsel %vm98, %v135, 0.0
    %138 = vadd.xlane.f32.xlu0 %v137
    %v139 = vpop.xlane.xlu0 %138
    %v140 = vrcp.pop %v139
    %v142 = vlaneseq
    %v143 = vshrl.u32 %v142, 7
    %v144 = vsub.s32 0, %v143
    %v145 = vrot.slane %v140, %v144
    %v146 = vlaneseq
    %v147 = vshrl.u32 %v146, 7
    %v148 = vsub.s32 1, %v147
    %v149 = vrot.slane %v140, %v148
    %v152 = vmul.f32 %v116, %v145
    %v153 = vmul.f32 %v118, %v149
    %156 = vset.pattern.permute.xlu0 0
    %157 = vperm.xlu0 %156, %v152
    %v158 = vpop.permute.xlu0 %157
    %159 = vset.pattern.permute.xlu0 0
    %160 = vperm.xlu0 %159, %v153
    %v161 = vpop.permute.xlu0 %160
    %v162 = vlaneseq
    %v163 = vshrl.u32 %v162, 7
    %v164 = vsub.s32 %v86, %v163
    %v165 = vrot.slane %v158, %v164
    %v166 = vlaneseq
    %v167 = vshrl.u32 %v166, 7
    %v168 = vsub.s32 %v86, %v167
    %v169 = vrot.slane %v161, %v168
    %v170 = vsel %vm95, %v169, %v165
    %172 = vst.msk [vmem:[#allocation7] sm:$0x3] %vm98, %v170
    // Predicated region
    $region18: #{tpu_custom_call.1} parent=1 // pred_check
      _
    $region19: #{tpu_custom_call.1} parent=1 // pred_check_branch
      %174 = sbr.rel (0) target = $region21
    $region20: #{tpu_custom_call.1} parent=1 // pred_region
      %s176 = ssub.s32 32, 32
      %177 = vsyncadd [#allocation4], %s176
      %s179 = sshll.u32 [#allocation7], 4
      %s180 = int_to_ptr.vmem [resolvable:$true] %s179
      %182 = dma.vmem_to_hbm [thread:$0]  %s180, 32, %s2, [#allocation4]
    $region21: #{tpu_custom_call.1} parent=1 // pred_fallthru
      _
    // Predicated region
    $region22: #{tpu_custom_call.1} parent=1 // pred_check
      _
    $region23: #{tpu_custom_call.1} parent=1 // pred_check_branch
      %184 = sbr.rel (0) target = $region25
    $region24: #{tpu_custom_call.1} parent=1 // pred_region
      %185 = dma.done [#allocation4], 32
    $region25: #{tpu_custom_call.1} parent=1 // pred_fallthru
      _
    %186 = vsyncpa [#allocation3], 1
    %187 = vsyncpa [#allocation6], 1
    %188 = vsyncpa [#allocation4], 1

</llo_original>
